<compile_context>
chip_gen: v5e
topology: v5e:2x2
jax: 0.10.0
libtpu: 0.0.40
codegen_flags: <defaults>
</compile_context>

<pallas_src>
import functools

import jax
import jax.numpy as jnp
from jax.experimental import pallas as pl
from jax.experimental.pallas import tpu as pltpu


def _cdiv(a, b):
    return -(-a // b)


def _round_up(a, b):
    return _cdiv(a, b) * b


def _coord_loss_kernel(out_ref, gt_ref, valid_ref, loss_ref):
    # Pure elementwise: |out - gt| * valid, then NaN -> 0 (matches the PyTorch
    # ordering; any NaN in the inputs propagates into the product and is
    # zeroed).  Computed in the promoted input dtype (loss_ref.dtype).
    cdt = loss_ref.dtype
    d = (jnp.abs(out_ref[...].astype(cdt) - gt_ref[...].astype(cdt))
         * valid_ref[...].astype(cdt))
    loss_ref[...] = jnp.where(jnp.isnan(d), jnp.zeros_like(d), d)


def _choose_group(B, JC, lane_cap=2048):
    """Largest divisor k of B with k*JC <= lane_cap lanes, preferring choices
    that leave at least 8 grouped rows (>= 8 sublanes per block + room to
    pipeline).  Falls back to k=1 (original (B, J*C) layout) when B is prime
    or J*C already exceeds the cap -- those cases are tiny/edge anyway."""
    best_any, best_deep = 1, 0
    k_max = min(B, max(1, lane_cap // max(JC, 1)))
    for k in range(1, k_max + 1):
        if B % k:
            continue
        best_any = k
        if B // k >= 8:
            best_deep = k
    return best_deep if best_deep else best_any


def _choose_row_tile(R, L, itemsize):
    """Rows per block: ~0.5 MiB per array per block so 4 arrays x 2 buffers
    stay ~4 MiB (far below the 16 MiB v5e scoped-VMEM default), with the
    128-lane padding accounted for.  Multiple of 8; full extent when R <= 8 or
    the whole problem fits one block.  Step counts are nudged even (>= 2 steps
    per TensorCore under v7x megacore sharding)."""
    if R <= 8:
        return R
    lane_padded = _round_up(L, 128)
    bytes_per_row = lane_padded * max(int(itemsize), 1)
    target_block_bytes = 512 * 1024
    tr = max(8, (target_block_bytes // bytes_per_row) // 8 * 8)
    if tr >= R:
        return R
    steps = _cdiv(R, tr)
    if steps >= 3 and steps % 2 == 1:
        # Best-effort: shrink the tile (VMEM-safe direction) until the grid
        # length is even, so both v7x cores get equal, pipelineable work.
        for cand in range(tr - 8, 7, -8):
            if _cdiv(R, cand) % 2 == 0:
                tr = cand
                break
    return tr


@functools.partial(jax.jit, static_argnames=("row_tile",))
def _coord_loss_pallas(out2d, gt2d, valid2d, *, row_tile):
    R, L = out2d.shape
    out_dtype = jnp.promote_types(
        jnp.promote_types(out2d.dtype, gt2d.dtype), valid2d.dtype)

    grid = (pl.cdiv(R, row_tile),)
    spec = pl.BlockSpec((row_tile, L), lambda r: (r, 0))

    return pl.pallas_call(
        _coord_loss_kernel,
        out_shape=jax.ShapeDtypeStruct((R, L), out_dtype),
        grid_spec=pltpu.PrefetchScalarGridSpec(
            num_scalar_prefetch=0,
            grid=grid,
            in_specs=[spec, spec, spec],
            out_specs=spec,
        ),
        compiler_params=pltpu.CompilerParams(
            dimension_semantics=("parallel",),
        ),
    )(out2d, gt2d, valid2d)


def coord_loss(coord_out, coord_gt, valid, is_3D=None):
    """Pallas implementation of CoordLoss.forward."""
    B, J, C = coord_out.shape

    if is_3D is not None and C > 2:
        # Fold the z-channel gate into `valid` (one fused XLA broadcast-mul).
        # is_3D is semantically {0, 1}; casting to valid.dtype keeps bf16
        # pipelines bf16-native (exact for 0/1 values).
        gate = is_3D.astype(valid.dtype).reshape(B, 1, 1)
        ch = jnp.arange(C, dtype=jnp.int32).reshape(1, 1, C)
        valid = jnp.where(ch >= 2, valid * gate, valid)

    JC = J * C
    k = _choose_group(B, JC)
    R, L = B // k, k * JC

    out_dtype = jnp.promote_types(
        jnp.promote_types(coord_out.dtype, coord_gt.dtype), valid.dtype)
    row_tile = _choose_row_tile(R, L, jnp.dtype(out_dtype).itemsize)

    # Free, contiguous reshapes -> lane-dense 2-D slabs.
    out2d = coord_out.reshape(R, L)
    gt2d = coord_gt.reshape(R, L)
    valid2d = valid.reshape(R, L)

    loss2d = _coord_loss_pallas(out2d, gt2d, valid2d, row_tile=row_tile)
    return loss2d.reshape(B, J, C)


def _coord_loss_ref(coord_out, coord_gt, valid, is_3D=None):
    """Pure-JAX reference mirroring the PyTorch forward exactly."""
    loss = jnp.abs(coord_out - coord_gt) * valid
    if is_3D is not None:
        loss_z = loss[:, :, 2:] * is_3D[:, None, None].astype(jnp.float32)
        loss = jnp.concatenate((loss[:, :, :2], loss_z), axis=2)
    return jnp.where(jnp.isnan(loss), 0.0, loss)


if __name__ == "__main__":
    key = jax.random.PRNGKey(0)
    keys = jax.random.split(key, 12)

    # Case 1: small (B=2, J=8, C=3), with is_3D and a NaN to exercise zeroing.
    B, J, C = 2, 8, 3
    co = jax.random.normal(keys[0], (B, J, C), jnp.float32)
    cg = jax.random.normal(keys[1], (B, J, C), jnp.float32)
    cg = cg.at[0, 3, 1].set(jnp.nan)
    vl = (jax.random.uniform(keys[2], (B, J, C)) > 0.3).astype(jnp.float32)
    i3 = (jax.random.uniform(keys[3], (B,)) > 0.5).astype(jnp.float32)

    out1 = jax.block_until_ready(coord_loss(co, cg, vl, i3))
    assert jnp.allclose(out1, _coord_loss_ref(co, cg, vl, i3), atol=1e-6), \
        "mismatch with is_3D"

    # Case 2: same inputs, is_3D=None path (no gate fold, no dummy input).
    out2 = jax.block_until_ready(coord_loss(co, cg, vl, None))
    assert jnp.allclose(out2, _coord_loss_ref(co, cg, vl, None), atol=1e-6), \
        "mismatch without is_3D"

    # Case 3: grouped lane-dense path (B=40, J=17, C=3 -> k=5, rows of 255).
    B3, J3, C3 = 40, 17, 3
    co3 = jax.random.normal(keys[4], (B3, J3, C3), jnp.float32)
    cg3 = jax.random.normal(keys[5], (B3, J3, C3), jnp.float32)
    cg3 = cg3.at[11, 4, 2].set(jnp.nan)
    vl3 = (jax.random.uniform(keys[6], (B3, J3, C3)) > 0.3).astype(jnp.float32)
    i33 = (jax.random.uniform(keys[7], (B3,)) > 0.5).astype(jnp.float32)
    out3 = jax.block_until_ready(coord_loss(co3, cg3, vl3, i33))
    assert jnp.allclose(out3, _coord_loss_ref(co3, cg3, vl3, i33), atol=1e-6), \
        "mismatch (grouped lane-dense path)"

    # Case 4: prime batch (B=13) -> fallback k=1, full-extent narrow block.
    B4, J4, C4 = 13, 17, 3
    co4 = jax.random.normal(keys[8], (B4, J4, C4), jnp.float32)
    cg4 = jax.random.normal(keys[9], (B4, J4, C4), jnp.float32)
    vl4 = (jax.random.uniform(keys[10], (B4, J4, C4)) > 0.3).astype(jnp.float32)
    i34 = (jax.random.uniform(keys[11], (B4,)) > 0.5).astype(jnp.float32)
    out4 = jax.block_until_ready(coord_loss(co4, cg4, vl4, i34))
    assert jnp.allclose(out4, _coord_loss_ref(co4, cg4, vl4, i34), atol=1e-6), \
        "mismatch (fallback layout)"

    # Case 5: direct multi-step grid with a partial trailing row tile
    # (R=20 rows, 384 lanes, row_tile=8 -> 3 grid steps, last block partial).
    R5, L5 = 20, 384
    a5 = jax.random.normal(jax.random.PRNGKey(7), (R5, L5), jnp.float32)
    b5 = jax.random.normal(jax.random.PRNGKey(8), (R5, L5), jnp.float32)
    b5 = b5.at[17, 100].set(jnp.nan)
    v5 = (jax.random.uniform(jax.random.PRNGKey(9), (R5, L5)) > 0.3).astype(jnp.float32)
    got5 = jax.block_until_ready(_coord_loss_pallas(a5, b5, v5, row_tile=8))
    raw5 = jnp.abs(a5 - b5) * v5
    ref5 = jnp.where(jnp.isnan(raw5), 0.0, raw5)
    assert jnp.allclose(got5, ref5, atol=1e-6), "mismatch (multi-tile grid)"

    print("KERNEL_OK")
</pallas_src>

<mosaic_0001>
module attributes {stable_mosaic.version = 11 : i64} {
  func.func @_coord_loss_kernel(%arg0: i32, %arg1: memref<1x48xf32, #tpu.memory_space<vmem>>, %arg2: memref<1x48xf32, #tpu.memory_space<vmem>>, %arg3: memref<1x48xf32, #tpu.memory_space<vmem>>, %arg4: memref<1x48xf32, #tpu.memory_space<vmem>>) attributes {dimension_semantics = [#tpu.dimension_semantics<parallel>], iteration_bounds = array<i64: 1>, scalar_prefetch = 0 : i64, scratch_operands = 0 : i64, tpu.core_type = #tpu.core_type<tc>, window_params = [{transform_indices = @transform_0, window_bounds = array<i64: 1, 48>}, {transform_indices = @transform_1, window_bounds = array<i64: 1, 48>}, {transform_indices = @transform_2, window_bounds = array<i64: 1, 48>}, {transform_indices = @transform_3, window_bounds = array<i64: 1, 48>}]} {
    %c0 = arith.constant 0 : index
    %c0_0 = arith.constant 0 : index
    %0 = vector.load %arg1[%c0, %c0_0] : memref<1x48xf32, #tpu.memory_space<vmem>>, vector<1x48xf32>
    %c0_1 = arith.constant 0 : index
    %c0_2 = arith.constant 0 : index
    %1 = vector.load %arg2[%c0_1, %c0_2] : memref<1x48xf32, #tpu.memory_space<vmem>>, vector<1x48xf32>
    %2 = arith.subf %0, %1 : vector<1x48xf32>
    %3 = math.absf %2 : vector<1x48xf32>
    %c0_3 = arith.constant 0 : index
    %c0_4 = arith.constant 0 : index
    %4 = vector.load %arg3[%c0_3, %c0_4] : memref<1x48xf32, #tpu.memory_space<vmem>>, vector<1x48xf32>
    %5 = arith.mulf %3, %4 : vector<1x48xf32>
    %6 = arith.cmpf one, %5, %5 : vector<1x48xf32>
    %cst = arith.constant 0.000000e+00 : f32
    %7 = vector.broadcast %cst : f32 to vector<1x48xf32>
    %8 = arith.select %6, %7, %5 : vector<1x48xi1>, vector<1x48xf32>
    %c0_5 = arith.constant 0 : index
    %c0_6 = arith.constant 0 : index
    %9 = vector.load %arg4[%c0_5, %c0_6] : memref<1x48xf32, #tpu.memory_space<vmem>>, vector<1x48xf32>
    tpu.vector_store %arg4[%c0_5, %c0_6], %8 {strides = array<i32>} : memref<1x48xf32, #tpu.memory_space<vmem>>, vector<1x48xf32>,
    return
  }
  func.func @transform_0(%arg0: i32) -> (i32, i32) {
    %c0_i32 = arith.constant 0 : i32
    %c0_i32_0 = arith.constant 0 : i32
    return %arg0, %c0_i32 : i32, i32
  }
  func.func @transform_1(%arg0: i32) -> (i32, i32) {
    %c0_i32 = arith.constant 0 : i32
    %c0_i32_0 = arith.constant 0 : i32
    return %arg0, %c0_i32 : i32, i32
  }
  func.func @transform_2(%arg0: i32) -> (i32, i32) {
    %c0_i32 = arith.constant 0 : i32
    %c0_i32_0 = arith.constant 0 : i32
    return %arg0, %c0_i32 : i32, i32
  }
  func.func @transform_3(%arg0: i32) -> (i32, i32) {
    %c0_i32 = arith.constant 0 : i32
    %c0_i32_0 = arith.constant 0 : i32
    return %arg0, %c0_i32 : i32, i32
  }
}

</mosaic_0001>

<llo_original>
// kernel: _coord_loss_pallas.1
$region0: #{_coord_loss_pallas.1}
  #allocation0 [shape = 'u32[]', space=smem, size = 0x4, offset = 0x4, fixed_abs, tag = 'smem constant byte address 0x4 - core index']
  #allocation1 [shape = 'u32[72,128]{1,0:T(1,128)}', space=vmem, size = 0x9000, scoped, tag = 'internal scratch']
  %s0 = inlined_call_operand.hbm [shape: f32[1,48], index: 0, kind: input, shape index: {}]
  %s1 = inlined_call_operand.hbm [shape: f32[1,48], index: 1, kind: input, shape index: {}]
  %s2 = inlined_call_operand.vmem [shape: f32[1,48], index: 2, kind: input, shape index: {}]
  %s3 = inlined_call_operand.hbm [shape: f32[1,48], index: 3, kind: output, shape index: {}]
  %s4 = sld [smem:[#allocation0]]
  $region30: #{_coord_loss_pallas.1} parent=0
    _
  %s6 = ssub.s32 1, %s4
  %s7 = scalar_select 0, %s6, %s4
  $region1: #{_coord_loss_pallas.1} parent=0
    #allocation2 [shape = 'u8[512]{0}', space=vmem, size = 0x400, scoped, tag = 'input window, operand 0, single buffered']
    #allocation3 [shape = 's32[1]{0}', space=sflag, size = 0x4, scoped, tag = 'scoped memory for _coord_loss_pallas.1']
    #allocation4 [shape = 's32[1]{0}', space=sflag, size = 0x4, scoped, tag = 'scoped memory for _coord_loss_pallas.1']
    #allocation5 [shape = 'u8[512]{0}', space=vmem, size = 0x400, scoped, tag = 'input window, operand 1, single buffered']
    #allocation6 [shape = 's32[1]{0}', space=sflag, size = 0x4, scoped, tag = 'scoped memory for _coord_loss_pallas.1']
    #allocation7 [shape = 'u8[512]{0}', space=vmem, size = 0x400, scoped, tag = 'output window, operand 0, single buffered']
    %8 = vsyncpa [#allocation3], 0
    %9 = vsyncpa [#allocation6], 0
    %10 = vsyncpa [#allocation4], 0
    // Predicated region
    $region2: #{_coord_loss_pallas.1} parent=1 // pred_check
      _
    $region3: #{_coord_loss_pallas.1} parent=1 // pred_check_branch
      %12 = sbr.rel (0) target = $region5
    $region4: #{_coord_loss_pallas.1} parent=1 // pred_region
      %14 = vsyncadd [#allocation3], 0
      %s16 = sshll.u32 %s0, 4
      %s17 = int_to_ptr.hbm [resolvable:$true] %s16
      %s18 = sshll.u32 [#allocation2], 4
      %s19 = int_to_ptr.vmem [resolvable:$true] %s18
      %21 = dma.hbm_to_vmem [thread:$0]  %s17, 16, %s19, [#allocation3]
    $region5: #{_coord_loss_pallas.1} parent=1 // pred_fallthru
      _
    // Predicated region
    $region6: #{_coord_loss_pallas.1} parent=1 // pred_check
      _
    $region7: #{_coord_loss_pallas.1} parent=1 // pred_check_branch
      %23 = sbr.rel (0) target = $region9
    $region8: #{_coord_loss_pallas.1} parent=1 // pred_region
      %25 = vsyncadd [#allocation6], 0
      %s27 = sshll.u32 %s1, 4
      %s28 = int_to_ptr.hbm [resolvable:$true] %s27
      %s29 = sshll.u32 [#allocation5], 4
      %s30 = int_to_ptr.vmem [resolvable:$true] %s29
      %32 = dma.hbm_to_vmem [thread:$0]  %s28, 16, %s30, [#allocation6]
    $region9: #{_coord_loss_pallas.1} parent=1 // pred_fallthru
      _
    // Predicated region
    $region10: #{_coord_loss_pallas.1} parent=1 // pred_check
      _
    $region11: #{_coord_loss_pallas.1} parent=1 // pred_check_branch
      %34 = sbr.rel (0) target = $region13
    $region12: #{_coord_loss_pallas.1} parent=1 // pred_region
      _
    $region13: #{_coord_loss_pallas.1} parent=1 // pred_fallthru
      _
    // Predicated region
    $region14: #{_coord_loss_pallas.1} parent=1 // pred_check
      _
    $region15: #{_coord_loss_pallas.1} parent=1 // pred_check_branch
      %36 = sbr.rel (0) target = $region17
    $region16: #{_coord_loss_pallas.1} parent=1 // pred_region
      %38 = dma.done [#allocation3], 16
    $region17: #{_coord_loss_pallas.1} parent=1 // pred_fallthru
      _
    // Predicated region
    $region18: #{_coord_loss_pallas.1} parent=1 // pred_check
      _
    $region19: #{_coord_loss_pallas.1} parent=1 // pred_check_branch
      %40 = sbr.rel (0) target = $region21
    $region20: #{_coord_loss_pallas.1} parent=1 // pred_region
      %42 = dma.done [#allocation6], 16
    $region21: #{_coord_loss_pallas.1} parent=1 // pred_fallthru
      _
    %v43 = vld [vmem:[#allocation2] sm:$0x1]
    %v44 = vld [vmem:[#allocation5] sm:$0x1]
    %v45 = vsub.f32 %v43, %v44
    %v46 = vand.u32 2147483647, %v45
    %v47 = vld [vmem:[%s2] sm:$0x1]
    %v48 = vmul.f32 %v46, %v47
    %vm49 = vcmp.ne.f32.partialorder %v48, %v48
    %v50 = vsel %vm49, 0.0, %v48
    %vm51 = vcmask 385024
    %52 = vst.msk [vmem:[#allocation7] sm:$0x1] %vm51, %v50
    // Predicated region
    $region22: #{_coord_loss_pallas.1} parent=1 // pred_check
      _
    $region23: #{_coord_loss_pallas.1} parent=1 // pred_check_branch
      %54 = sbr.rel (0) target = $region25
    $region24: #{_coord_loss_pallas.1} parent=1 // pred_region
      %56 = vsyncadd [#allocation4], 0
      %s58 = sshll.u32 [#allocation7], 4
      %s59 = int_to_ptr.vmem [resolvable:$true] %s58
      %s60 = sshll.u32 %s3, 4
      %s61 = int_to_ptr.hbm [resolvable:$true] %s60
      %63 = dma.vmem_to_hbm [thread:$0]  %s59, 16, %s61, [#allocation4]
    $region25: #{_coord_loss_pallas.1} parent=1 // pred_fallthru
      _
    // Predicated region
    $region26: #{_coord_loss_pallas.1} parent=1 // pred_check
      _
    $region27: #{_coord_loss_pallas.1} parent=1 // pred_check_branch
      %65 = sbr.rel (0) target = $region29
    $region28: #{_coord_loss_pallas.1} parent=1 // pred_region
      %67 = dma.done [#allocation4], 16
    $region29: #{_coord_loss_pallas.1} parent=1 // pred_fallthru
      _
    %68 = vsyncpa [#allocation3], 1
    %69 = vsyncpa [#allocation6], 1
    %70 = vsyncpa [#allocation4], 1

</llo_original>
